<compile_context>
chip_gen: v7x
topology: tpu7x:2x2x1
jax: 0.10.0
libtpu: 0.0.40
codegen_flags: <defaults>
</compile_context>

<pallas_src>
import functools

import jax
import jax.numpy as jnp
from jax.experimental import pallas as pl
from jax.experimental.pallas import tpu as pltpu

_LANE = 128      # vreg lane width
_SUBLANE = 8     # vreg sublane width


def _round_up(x, m):
    return (x + m - 1) // m * m


def _mlp_kernel(x_ref,
                w1_ref, b1_ref,
                w2_ref, b2_ref,
                w3_ref, b3_ref,
                w4_ref, b4_ref,
                w5_ref, b5_ref,
                o_ref):
    """All 5 linear layers + ReLUs fused; weights are VMEM-resident blocks."""

    def layer(h, w_ref, b_ref, relu):
        # Cast activations to the weight dtype (bf16 path) right before the
        # MXU op; accumulate in f32.
        h = jnp.dot(h.astype(w_ref.dtype), w_ref[...],
                    preferred_element_type=jnp.float32) + b_ref[...]
        return jnp.maximum(h, 0.0) if relu else h

    h = x_ref[...]
    h = layer(h, w1_ref, b1_ref, True)
    h = layer(h, w2_ref, b2_ref, True)
    h = layer(h, w3_ref, b3_ref, True)
    h = layer(h, w4_ref, b4_ref, True)
    h = layer(h, w5_ref, b5_ref, False)
    o_ref[...] = h.astype(o_ref.dtype)


@functools.partial(
    jax.jit, static_argnames=("input_size", "batch_block", "use_bf16"))
def mlp_forward(xb, params, *, input_size, batch_block=512, use_bf16=False):
    """Equivalent of MLPModel.forward.

    xb: any shape whose trailing dims flatten to `input_size`.
    params: dict of w1..w5 (in, out) and b1..b5 (1, out) float32 arrays.
    """
    x = xb.reshape(-1, input_size).astype(jnp.float32)   # xb.view(-1, input_size)
    B = x.shape[0]
    out_size = params["w5"].shape[1]
    compute_dtype = jnp.bfloat16 if use_bf16 else jnp.float32

    # ---- pad feature dims to the 128-lane width (numerically exact) --------
    din_p = _round_up(input_size, _LANE)
    x = jnp.pad(x, ((0, 0), (0, din_p - input_size)))

    ws, bs = [], []
    prev_unpadded, prev_padded = input_size, din_p
    for i in range(1, 6):
        w = params[f"w{i}"]
        b = params[f"b{i}"]
        dout = w.shape[1]
        dout_p = _round_up(dout, _LANE)
        w = jnp.pad(w, ((0, prev_padded - prev_unpadded), (0, dout_p - dout)))
        b = jnp.pad(b, ((0, 0), (0, dout_p - dout)))
        ws.append(w.astype(compute_dtype))
        bs.append(b.astype(jnp.float32))          # bias added in f32
        prev_unpadded, prev_padded = dout, dout_p
    dout_last_p = ws[-1].shape[1]

    # ---- pad batch to a multiple of the batch tile --------------------------
    TB = _round_up(min(batch_block, _round_up(B, _SUBLANE)), _SUBLANE)
    Bp = _round_up(B, TB)
    x = jnp.pad(x.astype(compute_dtype), ((0, Bp - B), (0, 0)))
    grid = (pl.cdiv(Bp, TB),)

    # ---- specs: x/out stream over the batch, weights/biases stay resident ---
    def _resident(shape):
        return pl.BlockSpec(shape, lambda i: (0, 0))

    operands = [x]
    in_specs = [pl.BlockSpec((TB, din_p), lambda i: (i, 0))]
    for w, b in zip(ws, bs):
        operands += [w, b]
        in_specs += [_resident(w.shape), _resident(b.shape)]

    out_spec = pl.BlockSpec((TB, dout_last_p), lambda i: (i, 0))

    out_padded = pl.pallas_call(
        _mlp_kernel,
        out_shape=jax.ShapeDtypeStruct((Bp, dout_last_p), jnp.float32),
        grid=grid,
        in_specs=in_specs,
        out_specs=out_spec,
        compiler_params=pltpu.CompilerParams(
            dimension_semantics=("parallel",)),
    )(*operands)

    # Slice away the batch and lane padding.
    return out_padded[:B, :out_size]


def init_params(key, input_size, n_features, output_size):
    """Deterministic init matching nn.Linear shapes (weights stored transposed)."""
    dims = [
        input_size,
        int(n_features),
        int(n_features / 2),
        int(n_features / 4),
        int(n_features / 8),
        output_size,
    ]
    params = {}
    for i in range(5):
        fan_in, fan_out = dims[i], dims[i + 1]
        key, kw, kb = jax.random.split(key, 3)
        bound = 1.0 / (fan_in ** 0.5)  # PyTorch nn.Linear default U(-1/sqrt(fan_in), ...)
        params[f"w{i + 1}"] = jax.random.uniform(
            kw, (fan_in, fan_out), jnp.float32, minval=-bound, maxval=bound)
        params[f"b{i + 1}"] = jax.random.uniform(
            kb, (1, fan_out), jnp.float32, minval=-bound, maxval=bound)
    return params


def _reference(x, params, input_size):
    """Plain-JAX f32 reference for sanity checking."""
    h = x.reshape(-1, input_size).astype(jnp.float32)
    for i in range(1, 5):
        h = jnp.maximum(h @ params[f"w{i}"] + params[f"b{i}"], 0.0)
    return h @ params["w5"] + params["b5"]


if __name__ == "__main__":
    input_size = 64      # flattened 8x8 input
    n_features = 64      # hidden sizes 64, 32, 16, 8
    output_size = 10
    batch = 200          # deliberately not a multiple of the batch tile

    key = jax.random.PRNGKey(0)
    key, kx = jax.random.split(key)
    xb = jax.random.normal(kx, (batch, 8, 8), dtype=jnp.float32)

    params = init_params(jax.random.PRNGKey(0), input_size, n_features, output_size)
    ref = _reference(xb, params, input_size)

    # f32 path (bit-faithful to the PyTorch fp32 module).
    out_f32 = mlp_forward(xb, params, input_size=input_size, batch_block=64)
    jax.block_until_ready(out_f32)
    assert out_f32.shape == (batch, output_size), out_f32.shape
    assert jnp.allclose(out_f32, ref, atol=1e-4, rtol=1e-4), "f32 mismatch vs reference"

    # bf16 MXU path (f32 accumulation) — relaxed tolerance.
    out_bf16 = mlp_forward(xb, params, input_size=input_size, batch_block=64,
                           use_bf16=True)
    jax.block_until_ready(out_bf16)
    assert out_bf16.shape == (batch, output_size), out_bf16.shape
    assert jnp.allclose(out_bf16, ref, atol=5e-2, rtol=5e-2), "bf16 mismatch vs reference"

    print("KERNEL_OK")
</pallas_src>

<mosaic_0001>
module attributes {stable_mosaic.version = 11 : i64} {
  func.func @_mlp_kernel(%arg0: i32, %arg1: memref<64x128xf32, #tpu.memory_space<vmem>>, %arg2: memref<128x128xf32, #tpu.memory_space<vmem>>, %arg3: memref<1x128xf32, #tpu.memory_space<vmem>>, %arg4: memref<128x128xf32, #tpu.memory_space<vmem>>, %arg5: memref<1x128xf32, #tpu.memory_space<vmem>>, %arg6: memref<128x128xf32, #tpu.memory_space<vmem>>, %arg7: memref<1x128xf32, #tpu.memory_space<vmem>>, %arg8: memref<128x128xf32, #tpu.memory_space<vmem>>, %arg9: memref<1x128xf32, #tpu.memory_space<vmem>>, %arg10: memref<128x128xf32, #tpu.memory_space<vmem>>, %arg11: memref<1x128xf32, #tpu.memory_space<vmem>>, %arg12: memref<64x128xf32, #tpu.memory_space<vmem>>) attributes {dimension_semantics = [#tpu.dimension_semantics<parallel>], iteration_bounds = array<i64: 4>, scalar_prefetch = 0 : i64, scratch_operands = 0 : i64, tpu.core_type = #tpu.core_type<tc>, window_params = [{transform_indices = @transform_0, window_bounds = array<i64: 64, 128>}, {pipeline_mode = #tpu.pipeline_mode<synchronous>, transform_indices = @transform_1, window_bounds = array<i64: 128, 128>}, {pipeline_mode = #tpu.pipeline_mode<synchronous>, transform_indices = @transform_2, window_bounds = array<i64: 1, 128>}, {pipeline_mode = #tpu.pipeline_mode<synchronous>, transform_indices = @transform_3, window_bounds = array<i64: 128, 128>}, {pipeline_mode = #tpu.pipeline_mode<synchronous>, transform_indices = @transform_4, window_bounds = array<i64: 1, 128>}, {pipeline_mode = #tpu.pipeline_mode<synchronous>, transform_indices = @transform_5, window_bounds = array<i64: 128, 128>}, {pipeline_mode = #tpu.pipeline_mode<synchronous>, transform_indices = @transform_6, window_bounds = array<i64: 1, 128>}, {pipeline_mode = #tpu.pipeline_mode<synchronous>, transform_indices = @transform_7, window_bounds = array<i64: 128, 128>}, {pipeline_mode = #tpu.pipeline_mode<synchronous>, transform_indices = @transform_8, window_bounds = array<i64: 1, 128>}, {pipeline_mode = #tpu.pipeline_mode<synchronous>, transform_indices = @transform_9, window_bounds = array<i64: 128, 128>}, {pipeline_mode = #tpu.pipeline_mode<synchronous>, transform_indices = @transform_10, window_bounds = array<i64: 1, 128>}, {transform_indices = @transform_11, window_bounds = array<i64: 64, 128>}]} {
    %c0 = arith.constant 0 : index
    %c0_0 = arith.constant 0 : index
    %0 = vector.load %arg1[%c0, %c0_0] : memref<64x128xf32, #tpu.memory_space<vmem>>, vector<64x128xf32>
    %c0_1 = arith.constant 0 : index
    %c0_2 = arith.constant 0 : index
    %1 = vector.load %arg2[%c0_1, %c0_2] : memref<128x128xf32, #tpu.memory_space<vmem>>, vector<128x128xf32>
    %cst = arith.constant dense<0.000000e+00> : vector<64x128xf32>
    %2 = tpu.matmul %0, %1, %cst {dimension_numbers = #tpu.dot_dimension_numbers<[1], [0], [0], [1], [0, 0, 1, 1], [], []>} : vector<64x128xf32>, vector<128x128xf32>, vector<64x128xf32> -> vector<64x128xf32>
    %c0_3 = arith.constant 0 : index
    %c0_4 = arith.constant 0 : index
    %3 = vector.load %arg3[%c0_3, %c0_4] : memref<1x128xf32, #tpu.memory_space<vmem>>, vector<1x128xf32>
    %4 = vector.broadcast %3 : vector<1x128xf32> to vector<64x128xf32>
    %5 = arith.addf %2, %4 : vector<64x128xf32>
    %cst_5 = arith.constant 0.000000e+00 : f32
    %6 = vector.broadcast %cst_5 : f32 to vector<64x128xf32>
    %7 = arith.maximumf %5, %6 : vector<64x128xf32>
    %c0_6 = arith.constant 0 : index
    %c0_7 = arith.constant 0 : index
    %8 = vector.load %arg4[%c0_6, %c0_7] : memref<128x128xf32, #tpu.memory_space<vmem>>, vector<128x128xf32>
    %cst_8 = arith.constant dense<0.000000e+00> : vector<64x128xf32>
    %9 = tpu.matmul %7, %8, %cst_8 {dimension_numbers = #tpu.dot_dimension_numbers<[1], [0], [0], [1], [0, 0, 1, 1], [], []>} : vector<64x128xf32>, vector<128x128xf32>, vector<64x128xf32> -> vector<64x128xf32>
    %c0_9 = arith.constant 0 : index
    %c0_10 = arith.constant 0 : index
    %10 = vector.load %arg5[%c0_9, %c0_10] : memref<1x128xf32, #tpu.memory_space<vmem>>, vector<1x128xf32>
    %11 = vector.broadcast %10 : vector<1x128xf32> to vector<64x128xf32>
    %12 = arith.addf %9, %11 : vector<64x128xf32>
    %cst_11 = arith.constant 0.000000e+00 : f32
    %13 = vector.broadcast %cst_11 : f32 to vector<64x128xf32>
    %14 = arith.maximumf %12, %13 : vector<64x128xf32>
    %c0_12 = arith.constant 0 : index
    %c0_13 = arith.constant 0 : index
    %15 = vector.load %arg6[%c0_12, %c0_13] : memref<128x128xf32, #tpu.memory_space<vmem>>, vector<128x128xf32>
    %cst_14 = arith.constant dense<0.000000e+00> : vector<64x128xf32>
    %16 = tpu.matmul %14, %15, %cst_14 {dimension_numbers = #tpu.dot_dimension_numbers<[1], [0], [0], [1], [0, 0, 1, 1], [], []>} : vector<64x128xf32>, vector<128x128xf32>, vector<64x128xf32> -> vector<64x128xf32>
    %c0_15 = arith.constant 0 : index
    %c0_16 = arith.constant 0 : index
    %17 = vector.load %arg7[%c0_15, %c0_16] : memref<1x128xf32, #tpu.memory_space<vmem>>, vector<1x128xf32>
    %18 = vector.broadcast %17 : vector<1x128xf32> to vector<64x128xf32>
    %19 = arith.addf %16, %18 : vector<64x128xf32>
    %cst_17 = arith.constant 0.000000e+00 : f32
    %20 = vector.broadcast %cst_17 : f32 to vector<64x128xf32>
    %21 = arith.maximumf %19, %20 : vector<64x128xf32>
    %c0_18 = arith.constant 0 : index
    %c0_19 = arith.constant 0 : index
    %22 = vector.load %arg8[%c0_18, %c0_19] : memref<128x128xf32, #tpu.memory_space<vmem>>, vector<128x128xf32>
    %cst_20 = arith.constant dense<0.000000e+00> : vector<64x128xf32>
    %23 = tpu.matmul %21, %22, %cst_20 {dimension_numbers = #tpu.dot_dimension_numbers<[1], [0], [0], [1], [0, 0, 1, 1], [], []>} : vector<64x128xf32>, vector<128x128xf32>, vector<64x128xf32> -> vector<64x128xf32>
    %c0_21 = arith.constant 0 : index
    %c0_22 = arith.constant 0 : index
    %24 = vector.load %arg9[%c0_21, %c0_22] : memref<1x128xf32, #tpu.memory_space<vmem>>, vector<1x128xf32>
    %25 = vector.broadcast %24 : vector<1x128xf32> to vector<64x128xf32>
    %26 = arith.addf %23, %25 : vector<64x128xf32>
    %cst_23 = arith.constant 0.000000e+00 : f32
    %27 = vector.broadcast %cst_23 : f32 to vector<64x128xf32>
    %28 = arith.maximumf %26, %27 : vector<64x128xf32>
    %c0_24 = arith.constant 0 : index
    %c0_25 = arith.constant 0 : index
    %29 = vector.load %arg10[%c0_24, %c0_25] : memref<128x128xf32, #tpu.memory_space<vmem>>, vector<128x128xf32>
    %cst_26 = arith.constant dense<0.000000e+00> : vector<64x128xf32>
    %30 = tpu.matmul %28, %29, %cst_26 {dimension_numbers = #tpu.dot_dimension_numbers<[1], [0], [0], [1], [0, 0, 1, 1], [], []>} : vector<64x128xf32>, vector<128x128xf32>, vector<64x128xf32> -> vector<64x128xf32>
    %c0_27 = arith.constant 0 : index
    %c0_28 = arith.constant 0 : index
    %31 = vector.load %arg11[%c0_27, %c0_28] : memref<1x128xf32, #tpu.memory_space<vmem>>, vector<1x128xf32>
    %32 = vector.broadcast %31 : vector<1x128xf32> to vector<64x128xf32>
    %33 = arith.addf %30, %32 : vector<64x128xf32>
    %c0_29 = arith.constant 0 : index
    %c0_30 = arith.constant 0 : index
    %34 = vector.load %arg12[%c0_29, %c0_30] : memref<64x128xf32, #tpu.memory_space<vmem>>, vector<64x128xf32>
    tpu.vector_store %arg12[%c0_29, %c0_30], %33 {strides = array<i32>} : memref<64x128xf32, #tpu.memory_space<vmem>>, vector<64x128xf32>,
    return
  }
  func.func @transform_0(%arg0: i32) -> (i32, i32) {
    %c0_i32 = arith.constant 0 : i32
    %c0_i32_0 = arith.constant 0 : i32
    return %arg0, %c0_i32 : i32, i32
  }
  func.func @transform_1(%arg0: i32) -> (i32, i32) {
    %c0_i32 = arith.constant 0 : i32
    %c0_i32_0 = arith.constant 0 : i32
    %c0_i32_1 = arith.constant 0 : i32
    return %c0_i32, %c0_i32_0 : i32, i32
  }
  func.func @transform_2(%arg0: i32) -> (i32, i32) {
    %c0_i32 = arith.constant 0 : i32
    %c0_i32_0 = arith.constant 0 : i32
    %c0_i32_1 = arith.constant 0 : i32
    return %c0_i32, %c0_i32_0 : i32, i32
  }
  func.func @transform_3(%arg0: i32) -> (i32, i32) {
    %c0_i32 = arith.constant 0 : i32
    %c0_i32_0 = arith.constant 0 : i32
    %c0_i32_1 = arith.constant 0 : i32
    return %c0_i32, %c0_i32_0 : i32, i32
  }
  func.func @transform_4(%arg0: i32) -> (i32, i32) {
    %c0_i32 = arith.constant 0 : i32
    %c0_i32_0 = arith.constant 0 : i32
    %c0_i32_1 = arith.constant 0 : i32
    return %c0_i32, %c0_i32_0 : i32, i32
  }
  func.func @transform_5(%arg0: i32) -> (i32, i32) {
    %c0_i32 = arith.constant 0 : i32
    %c0_i32_0 = arith.constant 0 : i32
    %c0_i32_1 = arith.constant 0 : i32
    return %c0_i32, %c0_i32_0 : i32, i32
  }
  func.func @transform_6(%arg0: i32) -> (i32, i32) {
    %c0_i32 = arith.constant 0 : i32
    %c0_i32_0 = arith.constant 0 : i32
    %c0_i32_1 = arith.constant 0 : i32
    return %c0_i32, %c0_i32_0 : i32, i32
  }
  func.func @transform_7(%arg0: i32) -> (i32, i32) {
    %c0_i32 = arith.constant 0 : i32
    %c0_i32_0 = arith.constant 0 : i32
    %c0_i32_1 = arith.constant 0 : i32
    return %c0_i32, %c0_i32_0 : i32, i32
  }
  func.func @transform_8(%arg0: i32) -> (i32, i32) {
    %c0_i32 = arith.constant 0 : i32
    %c0_i32_0 = arith.constant 0 : i32
    %c0_i32_1 = arith.constant 0 : i32
    return %c0_i32, %c0_i32_0 : i32, i32
  }
  func.func @transform_9(%arg0: i32) -> (i32, i32) {
    %c0_i32 = arith.constant 0 : i32
    %c0_i32_0 = arith.constant 0 : i32
    %c0_i32_1 = arith.constant 0 : i32
    return %c0_i32, %c0_i32_0 : i32, i32
  }
  func.func @transform_10(%arg0: i32) -> (i32, i32) {
    %c0_i32 = arith.constant 0 : i32
    %c0_i32_0 = arith.constant 0 : i32
    %c0_i32_1 = arith.constant 0 : i32
    return %c0_i32, %c0_i32_0 : i32, i32
  }
  func.func @transform_11(%arg0: i32) -> (i32, i32) {
    %c0_i32 = arith.constant 0 : i32
    %c0_i32_0 = arith.constant 0 : i32
    return %arg0, %c0_i32 : i32, i32
  }
}

</mosaic_0001>

<llo_original>
// kernel: mlp_forward.1
$region0: #{mlp_forward.1}
  #allocation0 [shape = 'u32[]', space=smem, size = 0x4, offset = 0x4, fixed_abs, tag = 'smem constant byte address 0x4 - core index']
  #allocation1 [shape = 'u32[144,128]{1,0:T(1,128)}', space=vmem, size = 0x12000, scoped, tag = 'internal scratch']
  %s0 = inlined_call_operand.vmem [shape: f32[256,128], index: 0, kind: input, shape index: {}]
  %s1 = inlined_call_operand.vmem [shape: f32[128,128], index: 1, kind: input, shape index: {}]
  %s2 = inlined_call_operand.vmem [shape: f32[1,128], index: 2, kind: input, shape index: {}]
  %s3 = inlined_call_operand.vmem [shape: f32[128,128], index: 3, kind: input, shape index: {}]
  %s4 = inlined_call_operand.vmem [shape: f32[1,128], index: 4, kind: input, shape index: {}]
  %s5 = inlined_call_operand.vmem [shape: f32[128,128], index: 5, kind: input, shape index: {}]
  %s6 = inlined_call_operand.vmem [shape: f32[1,128], index: 6, kind: input, shape index: {}]
  %s7 = inlined_call_operand.vmem [shape: f32[128,128], index: 7, kind: input, shape index: {}]
  %s8 = inlined_call_operand.vmem [shape: f32[1,128], index: 8, kind: input, shape index: {}]
  %s9 = inlined_call_operand.vmem [shape: f32[128,128], index: 9, kind: input, shape index: {}]
  %s10 = inlined_call_operand.vmem [shape: f32[1,128], index: 10, kind: input, shape index: {}]
  %s11 = inlined_call_operand.vmem [shape: f32[256,128], index: 11, kind: output, shape index: {}]
  %s12 = sld [smem:[#allocation0]]
  $region77: #{mlp_forward.1} parent=0
    _
  %s14 = ssub.s32 1, %s12
  %s15 = scalar_select 0, %s14, %s12
  loop: start=0, step=1, limit=6
  $region2: #{mlp_forward.1} parent=0 // loop_pre_header
    _
  $region3: #{mlp_forward.1} parent=0 // loop_header
    %s17 = sphi 0, %s21
    %p18 = scmp.ge.s32.totalorder %s17, 6
    %s27 = sphi 0, %s29
    %s30 = sphi 0, %s27
    %s31 = sphi 0, %s30
    %s47 = sphi 0, %s31
    %s51 = sphi 0, %s51
    %s53 = sphi 0, %s51
    %s54 = sphi 0, %s53
    %s68 = sphi 0, %s54
    %s72 = sphi 0, %s72
    %s74 = sphi 0, %s72
    %s75 = sphi 0, %s74
    %s89 = sphi 0, %s75
    %s93 = sphi 0, %s93
    %s95 = sphi 0, %s93
    %s96 = sphi 0, %s95
    %s110 = sphi 0, %s96
    %s114 = sphi 0, %s114
    %s116 = sphi 0, %s114
    %s117 = sphi 0, %s116
    %s131 = sphi 0, %s117
    %s135 = sphi 0, %s135
    %s137 = sphi 0, %s135
    %s138 = sphi 0, %s137
    %s152 = sphi 0, %s138
    %s156 = sphi 0, %s156
    %s158 = sphi 0, %s156
    %s159 = sphi 0, %s158
    %s173 = sphi 0, %s159
    %s177 = sphi 0, %s177
    %s179 = sphi 0, %s177
    %s180 = sphi 0, %s179
    %s194 = sphi 0, %s180
    %s198 = sphi 0, %s198
    %s200 = sphi 0, %s198
    %s201 = sphi 0, %s200
    %s215 = sphi 0, %s201
    %s219 = sphi 0, %s219
    %s221 = sphi 0, %s219
    %s222 = sphi 0, %s221
    %s236 = sphi 0, %s222
    %s240 = sphi 0, %s240
    %s242 = sphi 0, %s240
    %s243 = sphi 0, %s242
    %s257 = sphi 0, %s243
    %s263 = sphi 0, %s265
    %s266 = sphi 0, %s263
    %s267 = sphi 0, %s266
    %s283 = sphi 0, %s267
  $region4: #{mlp_forward.1} parent=0 // loop_header_branch
    %20 = sbr.rel (%p18) target = $region8
  $region5: #{mlp_forward.1} parent=0 // loop_body
    %s22 = ssub.s32 %s17, 1
    %s23 = ssub.s32 %s17, 2
    %s24 = sadd.s32 %s17, 1
    %s25 = ssub.s32 %s17, %s24
    %p26 = scmp.eq.s32.totalorder %s25, 0
    %s28 = sadd.s32 %s27, 1
    %s29 = scalar_select %p26, %s27, %s28
    %p32 = pneg %p26
    %p33 = scmp.eq.s32.totalorder %s17, 3
    %p34 = por %p32, %p33
    %p35 = scmp.ne.s32.totalorder %s27, %s30
    %p36 = scmp.eq.s32.totalorder %s17, 0
    %p37 = por %p35, %p36
    %p38 = scmp.ne.s32.totalorder %s27, %s30
    %p39 = scmp.eq.s32.totalorder %s22, 3
    %p40 = por %p38, %p39
    %p41 = scmp.ne.s32.totalorder %s30, %s31
    %p42 = scmp.eq.s32.totalorder %s22, 0
    %p43 = por %p41, %p42
    %p44 = scmp.ne.s32.totalorder %s30, %s31
    %p45 = scmp.eq.s32.totalorder %s23, 3
    %p46 = por %p44, %p45
    %p48 = scmp.ne.s32.totalorder %s31, %s47
    %p49 = scmp.eq.s32.totalorder %s23, 0
    %p50 = por %p48, %p49
    %s52 = sadd.s32 %s51, 1
    %p55 = scmp.eq.s32.totalorder %s17, 3
    %p56 = scmp.ne.s32.totalorder %s51, %s53
    %p57 = scmp.eq.s32.totalorder %s17, 0
    %p58 = por %p56, %p57
    %p59 = scmp.ne.s32.totalorder %s51, %s53
    %p60 = scmp.eq.s32.totalorder %s22, 3
    %p61 = por %p59, %p60
    %p62 = scmp.ne.s32.totalorder %s53, %s54
    %p63 = scmp.eq.s32.totalorder %s22, 0
    %p64 = por %p62, %p63
    %p65 = scmp.ne.s32.totalorder %s53, %s54
    %p66 = scmp.eq.s32.totalorder %s23, 3
    %p67 = por %p65, %p66
    %p69 = scmp.ne.s32.totalorder %s54, %s68
    %p70 = scmp.eq.s32.totalorder %s23, 0
    %p71 = por %p69, %p70
    %s73 = sadd.s32 %s72, 1
    %p76 = scmp.eq.s32.totalorder %s17, 3
    %p77 = scmp.ne.s32.totalorder %s72, %s74
    %p78 = scmp.eq.s32.totalorder %s17, 0
    %p79 = por %p77, %p78
    %p80 = scmp.ne.s32.totalorder %s72, %s74
    %p81 = scmp.eq.s32.totalorder %s22, 3
    %p82 = por %p80, %p81
    %p83 = scmp.ne.s32.totalorder %s74, %s75
    %p84 = scmp.eq.s32.totalorder %s22, 0
    %p85 = por %p83, %p84
    %p86 = scmp.ne.s32.totalorder %s74, %s75
    %p87 = scmp.eq.s32.totalorder %s23, 3
    %p88 = por %p86, %p87
    %p90 = scmp.ne.s32.totalorder %s75, %s89
    %p91 = scmp.eq.s32.totalorder %s23, 0
    %p92 = por %p90, %p91
    %s94 = sadd.s32 %s93, 1
    %p97 = scmp.eq.s32.totalorder %s17, 3
    %p98 = scmp.ne.s32.totalorder %s93, %s95
    %p99 = scmp.eq.s32.totalorder %s17, 0
    %p100 = por %p98, %p99
    %p101 = scmp.ne.s32.totalorder %s93, %s95
    %p102 = scmp.eq.s32.totalorder %s22, 3
    %p103 = por %p101, %p102
    %p104 = scmp.ne.s32.totalorder %s95, %s96
    %p105 = scmp.eq.s32.totalorder %s22, 0
    %p106 = por %p104, %p105
    %p107 = scmp.ne.s32.totalorder %s95, %s96
    %p108 = scmp.eq.s32.totalorder %s23, 3
    %p109 = por %p107, %p108
    %p111 = scmp.ne.s32.totalorder %s96, %s110
    %p112 = scmp.eq.s32.totalorder %s23, 0
    %p113 = por %p111, %p112
    %s115 = sadd.s32 %s114, 1
    %p118 = scmp.eq.s32.totalorder %s17, 3
    %p119 = scmp.ne.s32.totalorder %s114, %s116
    %p120 = scmp.eq.s32.totalorder %s17, 0
    %p121 = por %p119, %p120
    %p122 = scmp.ne.s32.totalorder %s114, %s116
    %p123 = scmp.eq.s32.totalorder %s22, 3
    %p124 = por %p122, %p123
    %p125 = scmp.ne.s32.totalorder %s116, %s117
    %p126 = scmp.eq.s32.totalorder %s22, 0
    %p127 = por %p125, %p126
    %p128 = scmp.ne.s32.totalorder %s116, %s117
    %p129 = scmp.eq.s32.totalorder %s23, 3
    %p130 = por %p128, %p129
    %p132 = scmp.ne.s32.totalorder %s117, %s131
    %p133 = scmp.eq.s32.totalorder %s23, 0
    %p134 = por %p132, %p133
    %s136 = sadd.s32 %s135, 1
    %p139 = scmp.eq.s32.totalorder %s17, 3
    %p140 = scmp.ne.s32.totalorder %s135, %s137
    %p141 = scmp.eq.s32.totalorder %s17, 0
    %p142 = por %p140, %p141
    %p143 = scmp.ne.s32.totalorder %s135, %s137
    %p144 = scmp.eq.s32.totalorder %s22, 3
    %p145 = por %p143, %p144
    %p146 = scmp.ne.s32.totalorder %s137, %s138
    %p147 = scmp.eq.s32.totalorder %s22, 0
    %p148 = por %p146, %p147
    %p149 = scmp.ne.s32.totalorder %s137, %s138
    %p150 = scmp.eq.s32.totalorder %s23, 3
    %p151 = por %p149, %p150
    %p153 = scmp.ne.s32.totalorder %s138, %s152
    %p154 = scmp.eq.s32.totalorder %s23, 0
    %p155 = por %p153, %p154
    %s157 = sadd.s32 %s156, 1
    %p160 = scmp.eq.s32.totalorder %s17, 3
    %p161 = scmp.ne.s32.totalorder %s156, %s158
    %p162 = scmp.eq.s32.totalorder %s17, 0
    %p163 = por %p161, %p162
    %p164 = scmp.ne.s32.totalorder %s156, %s158
    %p165 = scmp.eq.s32.totalorder %s22, 3
    %p166 = por %p164, %p165
    %p167 = scmp.ne.s32.totalorder %s158, %s159
    %p168 = scmp.eq.s32.totalorder %s22, 0
    %p169 = por %p167, %p168
    %p170 = scmp.ne.s32.totalorder %s158, %s159
    %p171 = scmp.eq.s32.totalorder %s23, 3
    %p172 = por %p170, %p171
    %p174 = scmp.ne.s32.totalorder %s159, %s173
    %p175 = scmp.eq.s32.totalorder %s23, 0
    %p176 = por %p174, %p175
    %s178 = sadd.s32 %s177, 1
    %p181 = scmp.eq.s32.totalorder %s17, 3
    %p182 = scmp.ne.s32.totalorder %s177, %s179
    %p183 = scmp.eq.s32.totalorder %s17, 0
    %p184 = por %p182, %p183
    %p185 = scmp.ne.s32.totalorder %s177, %s179
    %p186 = scmp.eq.s32.totalorder %s22, 3
    %p187 = por %p185, %p186
    %p188 = scmp.ne.s32.totalorder %s179, %s180
    %p189 = scmp.eq.s32.totalorder %s22, 0
    %p190 = por %p188, %p189
    %p191 = scmp.ne.s32.totalorder %s179, %s180
    %p192 = scmp.eq.s32.totalorder %s23, 3
    %p193 = por %p191, %p192
    %p195 = scmp.ne.s32.totalorder %s180, %s194
    %p196 = scmp.eq.s32.totalorder %s23, 0
    %p197 = por %p195, %p196
    %s199 = sadd.s32 %s198, 1
    %p202 = scmp.eq.s32.totalorder %s17, 3
    %p203 = scmp.ne.s32.totalorder %s198, %s200
    %p204 = scmp.eq.s32.totalorder %s17, 0
    %p205 = por %p203, %p204
    %p206 = scmp.ne.s32.totalorder %s198, %s200
    %p207 = scmp.eq.s32.totalorder %s22, 3
    %p208 = por %p206, %p207
    %p209 = scmp.ne.s32.totalorder %s200, %s201
    %p210 = scmp.eq.s32.totalorder %s22, 0
    %p211 = por %p209, %p210
    %p212 = scmp.ne.s32.totalorder %s200, %s201
    %p213 = scmp.eq.s32.totalorder %s23, 3
    %p214 = por %p212, %p213
    %p216 = scmp.ne.s32.totalorder %s201, %s215
    %p217 = scmp.eq.s32.totalorder %s23, 0
    %p218 = por %p216, %p217
    %s220 = sadd.s32 %s219, 1
    %p223 = scmp.eq.s32.totalorder %s17, 3
    %p224 = scmp.ne.s32.totalorder %s219, %s221
    %p225 = scmp.eq.s32.totalorder %s17, 0
    %p226 = por %p224, %p225
    %p227 = scmp.ne.s32.totalorder %s219, %s221
    %p228 = scmp.eq.s32.totalorder %s22, 3
    %p229 = por %p227, %p228
    %p230 = scmp.ne.s32.totalorder %s221, %s222
    %p231 = scmp.eq.s32.totalorder %s22, 0
    %p232 = por %p230, %p231
    %p233 = scmp.ne.s32.totalorder %s221, %s222
    %p234 = scmp.eq.s32.totalorder %s23, 3
    %p235 = por %p233, %p234
    %p237 = scmp.ne.s32.totalorder %s222, %s236
    %p238 = scmp.eq.s32.totalorder %s23, 0
    %p239 = por %p237, %p238
    %s241 = sadd.s32 %s240, 1
    %p244 = scmp.eq.s32.totalorder %s17, 3
    %p245 = scmp.ne.s32.totalorder %s240, %s242
    %p246 = scmp.eq.s32.totalorder %s17, 0
    %p247 = por %p245, %p246
    %p248 = scmp.ne.s32.totalorder %s240, %s242
    %p249 = scmp.eq.s32.totalorder %s22, 3
    %p250 = por %p248, %p249
    %p251 = scmp.ne.s32.totalorder %s242, %s243
    %p252 = scmp.eq.s32.totalorder %s22, 0
    %p253 = por %p251, %p252
    %p254 = scmp.ne.s32.totalorder %s242, %s243
    %p255 = scmp.eq.s32.totalorder %s23, 3
    %p256 = por %p254, %p255
    %p258 = scmp.ne.s32.totalorder %s243, %s257
    %p259 = scmp.eq.s32.totalorder %s23, 0
    %p260 = por %p258, %p259
    %s261 = ssub.s32 %s17, %s24
    %p262 = scmp.eq.s32.totalorder %s261, 0
    %s264 = sadd.s32 %s263, 1
    %s265 = scalar_select %p262, %s263, %s264
    %p268 = pneg %p262
    %p269 = scmp.eq.s32.totalorder %s17, 3
    %p270 = por %p268, %p269
    %p271 = scmp.ne.s32.totalorder %s263, %s266
    %p272 = scmp.eq.s32.totalorder %s17, 0
    %p273 = por %p271, %p272
    %p274 = scmp.ne.s32.totalorder %s263, %s266
    %p275 = scmp.eq.s32.totalorder %s22, 3
    %p276 = por %p274, %p275
    %p277 = scmp.ne.s32.totalorder %s266, %s267
    %p278 = scmp.eq.s32.totalorder %s22, 0
    %p279 = por %p277, %p278
    %p280 = scmp.ne.s32.totalorder %s266, %s267
    %p281 = scmp.eq.s32.totalorder %s23, 3
    %p282 = por %p280, %p281
    %p284 = scmp.ne.s32.totalorder %s267, %s283
    %p285 = scmp.eq.s32.totalorder %s23, 0
    %p286 = por %p284, %p285
    %p287 = scmp.le.s32.totalorder 1, %s17
    %p288 = scmp.lt.s32.totalorder %s17, 5
    %p289 = pnand %p287, %p288
    %p290 = pneg %p289
    // Predicated region
    $region9: #{mlp_forward.1} parent=5 // pred_check
      _
    $region10: #{mlp_forward.1} parent=5 // pred_check_branch
      %292 = sbr.rel (%p289) target = $region12
    $region11: #{mlp_forward.1} parent=5 // pred_region
      %s293 = ssub.s32 %s17, 1
      // Predicated region
      $region13: #{mlp_forward.1} parent=11 // pred_check
        %p294 = pneg %p64
      $region14: #{mlp_forward.1} parent=11 // pred_check_branch
        %296 = sbr.rel (%p294) target = $region16
      $region15: #{mlp_forward.1} parent=11 // pred_region
        _
      $region16: #{mlp_forward.1} parent=11 // pred_fallthru
        _
      // Predicated region
      $region17: #{mlp_forward.1} parent=11 // pred_check
        %p297 = pneg %p85
      $region18: #{mlp_forward.1} parent=11 // pred_check_branch
        %299 = sbr.rel (%p297) target = $region20
      $region19: #{mlp_forward.1} parent=11 // pred_region
        _
      $region20: #{mlp_forward.1} parent=11 // pred_fallthru
        _
      // Predicated region
      $region21: #{mlp_forward.1} parent=11 // pred_check
        %p300 = pneg %p106
      $region22: #{mlp_forward.1} parent=11 // pred_check_branch
        %302 = sbr.rel (%p300) target = $region24
      $region23: #{mlp_forward.1} parent=11 // pred_region
        _
      $region24: #{mlp_forward.1} parent=11 // pred_fallthru
        _
      // Predicated region
      $region25: #{mlp_forward.1} parent=11 // pred_check
        %p303 = pneg %p127
      $region26: #{mlp_forward.1} parent=11 // pred_check_branch
        %305 = sbr.rel (%p303) target = $region28
      $region27: #{mlp_forward.1} parent=11 // pred_region
        _
      $region28: #{mlp_forward.1} parent=11 // pred_fallthru
        _
      // Predicated region
      $region29: #{mlp_forward.1} parent=11 // pred_check
        %p306 = pneg %p148
      $region30: #{mlp_forward.1} parent=11 // pred_check_branch
        %308 = sbr.rel (%p306) target = $region32
      $region31: #{mlp_forward.1} parent=11 // pred_region
        _
      $region32: #{mlp_forward.1} parent=11 // pred_fallthru
        _
      // Predicated region
      $region33: #{mlp_forward.1} parent=11 // pred_check
        %p309 = pneg %p169
      $region34: #{mlp_forward.1} parent=11 // pred_check_branch
        %311 = sbr.rel (%p309) target = $region36
      $region35: #{mlp_forward.1} parent=11 // pred_region
        _
      $region36: #{mlp_forward.1} parent=11 // pred_fallthru
        _
      // Predicated region
      $region37: #{mlp_forward.1} parent=11 // pred_check
        %p312 = pneg %p190
      $region38: #{mlp_forward.1} parent=11 // pred_check_branch
        %314 = sbr.rel (%p312) target = $region40
      $region39: #{mlp_forward.1} parent=11 // pred_region
        _
      $region40: #{mlp_forward.1} parent=11 // pred_fallthru
        _
      // Predicated region
      $region41: #{mlp_forward.1} parent=11 // pred_check
        %p315 = pneg %p211
      $region42: #{mlp_forward.1} parent=11 // pred_check_branch
        %317 = sbr.rel (%p315) target = $region44
      $region43: #{mlp_forward.1} parent=11 // pred_region
        _
      $region44: #{mlp_forward.1} parent=11 // pred_fallthru
        _
      // Predicated region
      $region45: #{mlp_forward.1} parent=11 // pred_check
        %p318 = pneg %p232
      $region46: #{mlp_forward.1} parent=11 // pred_check_branch
        %320 = sbr.rel (%p318) target = $region48
      $region47: #{mlp_forward.1} parent=11 // pred_region
        _
      $region48: #{mlp_forward.1} parent=11 // pred_fallthru
        _
      // Predicated region
      $region49: #{mlp_forward.1} parent=11 // pred_check
        %p321 = pneg %p253
      $region50: #{mlp_forward.1} parent=11 // pred_check_branch
        %323 = sbr.rel (%p321) target = $region52
      $region51: #{mlp_forward.1} parent=11 // pred_region
        _
      $region52: #{mlp_forward.1} parent=11 // pred_fallthru
        _
    $region12: #{mlp_forward.1} parent=5 // pred_fallthru
      _
    %p324 = scmp.lt.s32.totalorder %s17, 4
    // Predicated region
    $region53: #{mlp_forward.1} parent=5 // pred_check
      %p325 = pneg %p324
    $region54: #{mlp_forward.1} parent=5 // pred_check_branch
      %327 = sbr.rel (%p325) target = $region56
    $region55: #{mlp_forward.1} parent=5 // pred_region
      // Predicated region
      $region57: #{mlp_forward.1} parent=55 // pred_check
        %p328 = pneg %p37
      $region58: #{mlp_forward.1} parent=55 // pred_check_branch
        %330 = sbr.rel (%p328) target = $region60
      $region59: #{mlp_forward.1} parent=55 // pred_region
        %s331 = smul.u32 8, %s17
        %p332 = scmp.lt.s32.totalorder %s331, 31
        %s333 = scalar_select %p332, %s331, 31
        %s334 = smul.addr %s333, 8
        %s335 = scalar_lea.vmem %s0, %s334
        %s336 = smul.u32 8, %s17
      $region60: #{mlp_forward.1} parent=55 // pred_fallthru
        _
    $region56: #{mlp_forward.1} parent=5 // pred_fallthru
      _
    %p337 = scmp.le.s32.totalorder 1, %s17
    %p338 = scmp.lt.s32.totalorder %s17, 5
    %p339 = pnand %p337, %p338
    %p340 = pneg %p339
    // Predicated region
    $region61: #{mlp_forward.1} parent=5 // pred_check
      _
    $region62: #{mlp_forward.1} parent=5 // pred_check_branch
      %342 = sbr.rel (%p339) target = $region64
    $region63: #{mlp_forward.1} parent=5 // pred_region
      %s343 = ssub.s32 %s17, 1
      %s344 = smul.u32 8, %s22
      %p345 = scmp.lt.s32.totalorder %s344, 31
      %s346 = scalar_select %p345, %s344, 31
      %s347 = smul.addr %s346, 8
      %s348 = scalar_lea.vmem %s0, %s347
      %p349 = pneg %p43
      %p350 = pneg %p40
      %p351 = pneg %p64
      %p352 = pneg %p61
      %p353 = pneg %p85
      %p354 = pneg %p82
      %p355 = pneg %p106
      %p356 = pneg %p103
      %p357 = pneg %p127
      %p358 = pneg %p124
      %p359 = pneg %p148
      %p360 = pneg %p145
      %p361 = pneg %p169
      %p362 = pneg %p166
      %p363 = pneg %p190
      %p364 = pneg %p187
      %p365 = pneg %p211
      %p366 = pneg %p208
      %p367 = pneg %p232
      %p368 = pneg %p229
      %p369 = pneg %p253
      %p370 = pneg %p250
      %p371 = pneg %p279
      %p372 = pneg %p276
      %s373 = smul.u32 8, %s22
      %p374 = scmp.lt.s32.totalorder %s373, 31
      %s375 = scalar_select %p374, %s373, 31
      %s376 = smul.addr %s375, 8
      %s377 = scalar_lea.vmem %s11, %s376
      %s378 = smul.u32 8, %s22
      %p379 = scmp.lt.s32.totalorder %s378, 31
      %s380 = scalar_select %p379, %s378, 31
      %s381 = smul.addr %s380, 8
      %s382 = scalar_lea.vmem %s0, %s381
      %s383 = smul.u32 8, %s22
      %s384 = smul.u32 8, %s22
      %p385 = scmp.lt.s32.totalorder %s384, 31
      %s386 = scalar_select %p385, %s384, 31
      %s387 = smul.addr %s386, 8
      %s388 = scalar_lea.vmem %s11, %s387
      %s389 = smul.u32 8, %s22
      %v390 = vld [vmem:[%s382] sm:$0xff]
      %v391 = vld [vmem:[%s382 + $0x8] sm:$0xff]
      %v392 = vld [vmem:[%s382 + $0x10] sm:$0xff]
      %v393 = vld [vmem:[%s382 + $0x18] sm:$0xff]
      %v394 = vld [vmem:[%s382 + $0x20] sm:$0xff]
      %v395 = vld [vmem:[%s382 + $0x28] sm:$0xff]
      %v396 = vld [vmem:[%s382 + $0x30] sm:$0xff]
      %v397 = vld [vmem:[%s382 + $0x38] sm:$0xff]
      %v398 = vld [vmem:[%s1] sm:$0xff]
      %v399 = vld [vmem:[%s1 + $0x8] sm:$0xff]
      %v400 = vld [vmem:[%s1 + $0x10] sm:$0xff]
      %v401 = vld [vmem:[%s1 + $0x18] sm:$0xff]
      %v402 = vld [vmem:[%s1 + $0x20] sm:$0xff]
      %v403 = vld [vmem:[%s1 + $0x28] sm:$0xff]
      %v404 = vld [vmem:[%s1 + $0x30] sm:$0xff]
      %v405 = vld [vmem:[%s1 + $0x38] sm:$0xff]
      %v406 = vld [vmem:[%s1 + $0x40] sm:$0xff]
      %v407 = vld [vmem:[%s1 + $0x48] sm:$0xff]
      %v408 = vld [vmem:[%s1 + $0x50] sm:$0xff]
      %v409 = vld [vmem:[%s1 + $0x58] sm:$0xff]
      %v410 = vld [vmem:[%s1 + $0x60] sm:$0xff]
      %v411 = vld [vmem:[%s1 + $0x68] sm:$0xff]
      %v412 = vld [vmem:[%s1 + $0x70] sm:$0xff]
      %v413 = vld [vmem:[%s1 + $0x78] sm:$0xff]
      %v414 = vld [vmem:[%s2] sm:$0x1]
      %v416 = vlaneseq
      %v417 = vshrl.u32 %v416, 7
      %v418 = vsub.s32 0, %v417
      %v419 = vrot.slane %v414, %v418
      %421 = vmatprep.subr.mxu0 0.0
      %422 = vmatpush1.msra.mxu0 %v398
      %423 = vmatprep.subr.mxu0 0.0
      %424 = vmatpush1.msra.mxu0 %v399
      %425 = vmatprep.subr.mxu0 0.0
      %426 = vmatpush1.msra.mxu0 %v400
      %427 = vmatprep.subr.mxu0 0.0
      %428 = vmatpush1.msra.mxu0 %v401
      %429 = vmatprep.subr.mxu0 0.0
      %430 = vmatpush1.msra.mxu0 %v402
      %431 = vmatprep.subr.mxu0 0.0
      %432 = vmatpush1.msra.mxu0 %v403
      %433 = vmatprep.subr.mxu0 0.0
      %434 = vmatpush1.msra.mxu0 %v404
      %435 = vmatprep.subr.mxu0 0.0
      %436 = vmatpush1.msra.mxu0 %v405
      %437 = vmatprep.subr.mxu0 0.0
      %438 = vmatpush1.msra.mxu0 %v406
      %439 = vmatprep.subr.mxu0 0.0
      %440 = vmatpush1.msra.mxu0 %v407
      %441 = vmatprep.subr.mxu0 0.0
      %442 = vmatpush1.msra.mxu0 %v408
      %443 = vmatprep.subr.mxu0 0.0
      %444 = vmatpush1.msra.mxu0 %v409
      %445 = vmatprep.subr.mxu0 0.0
      %446 = vmatpush1.msra.mxu0 %v410
      %447 = vmatprep.subr.mxu0 0.0
      %448 = vmatpush1.msra.mxu0 %v411
      %449 = vmatprep.subr.mxu0 0.0
      %450 = vmatpush1.msra.mxu0 %v412
      %451 = vmatprep.subr.mxu0 0.0
      %452 = vmatpush1.msra.mxu0 %v413
      %453 = vmatprep.subr.mxu0 0.0
      %454 = vmatpush1.msra.mxu0 0.0
      %455 = vmatprep.subr.mxu0 0.0
      %456 = vmatpush1.msra.mxu0 0.0
      %457 = vmatprep.subr.mxu0 0.0
      %458 = vmatpush1.msra.mxu0 0.0
      %459 = vmatprep.subr.mxu0 0.0
      %460 = vmatpush1.msra.mxu0 0.0
      %461 = vmatprep.subr.mxu0 0.0
      %462 = vmatpush1.msra.mxu0 0.0
      %463 = vmatprep.subr.mxu0 0.0
      %464 = vmatpush1.msra.mxu0 0.0
      %465 = vmatprep.subr.mxu0 0.0
      %466 = vmatpush1.msra.mxu0 0.0
      %467 = vmatprep.subr.mxu0 0.0
      %468 = vmatpush1.msra.mxu0 0.0
      %469 = vmatprep.subr.mxu0 0.0
      %470 = vmatpush1.msra.mxu0 0.0
      %471 = vmatprep.subr.mxu0 0.0
      %472 = vmatpush1.msra.mxu0 0.0
      %473 = vmatprep.subr.mxu0 0.0
      %474 = vmatpush1.msra.mxu0 0.0
      %475 = vmatprep.subr.mxu0 0.0
      %476 = vmatpush1.msra.mxu0 0.0
      %477 = vmatprep.subr.mxu0 0.0
      %478 = vmatpush1.msra.mxu0 0.0
      %479 = vmatprep.subr.mxu0 0.0
      %480 = vmatpush1.msra.mxu0 0.0
      %481 = vmatprep.subr.mxu0 0.0
      %482 = vmatpush1.msra.mxu0 0.0
      %483 = vmatprep.subr.mxu0 0.0
      %484 = vmatpush1.msra.mxu0 0.0
      %485 = vmatprep.mubr.f32.mxu0 0.0
      %486 = vmatmul.mubr.f32.gmra.mrb[0].mxu0 %v390
      %v487 = vpop.f32.mrb[0].mxu0
      %v488 = vadd.f32 %v419, %v487
      %v489 = vpop.f32.mrb[0].mxu0
      %490 = vmatprep.mubr.f32.mxu0 0.0
      %491 = vmatmul.mubr.f32.gmra.mrb[0].mxu0 %v391
      %v492 = vpop.f32.mrb[0].mxu0
      %v493 = vadd.f32 %v419, %v492
      %v494 = vpop.f32.mrb[0].mxu0
      %495 = vmatprep.mubr.f32.mxu0 0.0
      %496 = vmatmul.mubr.f32.gmra.mrb[0].mxu0 %v392
      %v497 = vpop.f32.mrb[0].mxu0
      %v498 = vadd.f32 %v419, %v497
      %v499 = vpop.f32.mrb[0].mxu0
      %500 = vmatprep.mubr.f32.mxu0 0.0
      %501 = vmatmul.mubr.f32.gmra.mrb[0].mxu0 %v393
      %v502 = vpop.f32.mrb[0].mxu0
      %v503 = vadd.f32 %v419, %v502
      %v504 = vpop.f32.mrb[0].mxu0
      %505 = vmatprep.mubr.f32.mxu0 0.0
      %506 = vmatmul.mubr.f32.gmra.mrb[0].mxu0 %v394
      %v507 = vpop.f32.mrb[0].mxu0
      %v508 = vadd.f32 %v419, %v507
      %v509 = vpop.f32.mrb[0].mxu0
      %510 = vmatprep.mubr.f32.mxu0 0.0
      %511 = vmatmul.mubr.f32.gmra.mrb[0].mxu0 %v395
      %v512 = vpop.f32.mrb[0].mxu0
      %v513 = vadd.f32 %v419, %v512
      %v514 = vpop.f32.mrb[0].mxu0
      %515 = vmatprep.mubr.f32.mxu0 0.0
      %516 = vmatmul.mubr.f32.gmra.mrb[0].mxu0 %v396
      %v517 = vpop.f32.mrb[0].mxu0
      %v518 = vadd.f32 %v419, %v517
      %v519 = vpop.f32.mrb[0].mxu0
      %520 = vmatprep.mubr.f32.mxu0 0.0
      %521 = vmatmul.mubr.f32.gmra.mrb[0].mxu0 %v397
      %v522 = vpop.f32.mrb[0].mxu0
      %v523 = vadd.f32 %v419, %v522
      %v524 = vpop.f32.mrb[0].mxu0
      %525 = vdwg.mxu0
      %v526 = vmax.f32 %v488, 0.0
      %v527 = vmax.f32 %v493, 0.0
      %v528 = vmax.f32 %v498, 0.0
      %v529 = vmax.f32 %v503, 0.0
      %v530 = vmax.f32 %v508, 0.0
      %v531 = vmax.f32 %v513, 0.0
      %v532 = vmax.f32 %v518, 0.0
      %v533 = vmax.f32 %v523, 0.0
      %v534 = vld [vmem:[%s3] sm:$0xff]
      %v535 = vld [vmem:[%s3 + $0x8] sm:$0xff]
      %v536 = vld [vmem:[%s3 + $0x10] sm:$0xff]
      %v537 = vld [vmem:[%s3 + $0x18] sm:$0xff]
      %v538 = vld [vmem:[%s3 + $0x20] sm:$0xff]
      %v539 = vld [vmem:[%s3 + $0x28] sm:$0xff]
      %v540 = vld [vmem:[%s3 + $0x30] sm:$0xff]
      %v541 = vld [vmem:[%s3 + $0x38] sm:$0xff]
      %v542 = vld [vmem:[%s3 + $0x40] sm:$0xff]
      %v543 = vld [vmem:[%s3 + $0x48] sm:$0xff]
      %v544 = vld [vmem:[%s3 + $0x50] sm:$0xff]
      %v545 = vld [vmem:[%s3 + $0x58] sm:$0xff]
      %v546 = vld [vmem:[%s3 + $0x60] sm:$0xff]
      %v547 = vld [vmem:[%s3 + $0x68] sm:$0xff]
      %v548 = vld [vmem:[%s3 + $0x70] sm:$0xff]
      %v549 = vld [vmem:[%s3 + $0x78] sm:$0xff]
      %v550 = vld [vmem:[%s4] sm:$0x1]
      %v552 = vlaneseq
      %v553 = vshrl.u32 %v552, 7
      %v554 = vsub.s32 0, %v553
      %v555 = vrot.slane %v550, %v554
      %557 = vmatprep.subr.mxu0 0.0
      %558 = vmatpush1.msra.mxu0 %v534
      %559 = vmatprep.subr.mxu0 0.0
      %560 = vmatpush1.msra.mxu0 %v535
      %561 = vmatprep.subr.mxu0 0.0
      %562 = vmatpush1.msra.mxu0 %v536
      %563 = vmatprep.subr.mxu0 0.0
      %564 = vmatpush1.msra.mxu0 %v537
      %565 = vmatprep.subr.mxu0 0.0
      %566 = vmatpush1.msra.mxu0 %v538
      %567 = vmatprep.subr.mxu0 0.0
      %568 = vmatpush1.msra.mxu0 %v539
      %569 = vmatprep.subr.mxu0 0.0
      %570 = vmatpush1.msra.mxu0 %v540
      %571 = vmatprep.subr.mxu0 0.0
      %572 = vmatpush1.msra.mxu0 %v541
      %573 = vmatprep.subr.mxu0 0.0
      %574 = vmatpush1.msra.mxu0 %v542
      %575 = vmatprep.subr.mxu0 0.0
      %576 = vmatpush1.msra.mxu0 %v543
      %577 = vmatprep.subr.mxu0 0.0
      %578 = vmatpush1.msra.mxu0 %v544
      %579 = vmatprep.subr.mxu0 0.0
      %580 = vmatpush1.msra.mxu0 %v545
      %581 = vmatprep.subr.mxu0 0.0
      %582 = vmatpush1.msra.mxu0 %v546
      %583 = vmatprep.subr.mxu0 0.0
      %584 = vmatpush1.msra.mxu0 %v547
      %585 = vmatprep.subr.mxu0 0.0
      %586 = vmatpush1.msra.mxu0 %v548
      %587 = vmatprep.subr.mxu0 0.0
      %588 = vmatpush1.msra.mxu0 %v549
      %589 = vmatprep.subr.mxu0 0.0
      %590 = vmatpush1.msra.mxu0 0.0
      %591 = vmatprep.subr.mxu0 0.0
      %592 = vmatpush1.msra.mxu0 0.0
      %593 = vmatprep.subr.mxu0 0.0
      %594 = vmatpush1.msra.mxu0 0.0
      %595 = vmatprep.subr.mxu0 0.0
      %596 = vmatpush1.msra.mxu0 0.0
      %597 = vmatprep.subr.mxu0 0.0
      %598 = vmatpush1.msra.mxu0 0.0
      %599 = vmatprep.subr.mxu0 0.0
      %600 = vmatpush1.msra.mxu0 0.0
      %601 = vmatprep.subr.mxu0 0.0
      %602 = vmatpush1.msra.mxu0 0.0
      %603 = vmatprep.subr.mxu0 0.0
      %604 = vmatpush1.msra.mxu0 0.0
      %605 = vmatprep.subr.mxu0 0.0
      %606 = vmatpush1.msra.mxu0 0.0
      %607 = vmatprep.subr.mxu0 0.0
      %608 = vmatpush1.msra.mxu0 0.0
      %609 = vmatprep.subr.mxu0 0.0
      %610 = vmatpush1.msra.mxu0 0.0
      %611 = vmatprep.subr.mxu0 0.0
      %612 = vmatpush1.msra.mxu0 0.0
      %613 = vmatprep.subr.mxu0 0.0
      %614 = vmatpush1.msra.mxu0 0.0
      %615 = vmatprep.subr.mxu0 0.0
      %616 = vmatpush1.msra.mxu0 0.0
      %617 = vmatprep.subr.mxu0 0.0
      %618 = vmatpush1.msra.mxu0 0.0
      %619 = vmatprep.subr.mxu0 0.0
      %620 = vmatpush1.msra.mxu0 0.0
      %621 = vmatprep.mubr.f32.mxu0 0.0
      %622 = vmatmul.mubr.f32.gmra.mrb[0].mxu0 %v526
      %v623 = vpop.f32.mrb[0].mxu0
      %v624 = vadd.f32 %v555, %v623
      %v625 = vpop.f32.mrb[0].mxu0
      %626 = vmatprep.mubr.f32.mxu0 0.0
      %627 = vmatmul.mubr.f32.gmra.mrb[0].mxu0 %v527
      %v628 = vpop.f32.mrb[0].mxu0
      %v629 = vadd.f32 %v555, %v628
      %v630 = vpop.f32.mrb[0].mxu0
      %631 = vmatprep.mubr.f32.mxu0 0.0
      %632 = vmatmul.mubr.f32.gmra.mrb[0].mxu0 %v528
      %v633 = vpop.f32.mrb[0].mxu0
      %v634 = vadd.f32 %v555, %v633
      %v635 = vpop.f32.mrb[0].mxu0
      %636 = vmatprep.mubr.f32.mxu0 0.0
      %637 = vmatmul.mubr.f32.gmra.mrb[0].mxu0 %v529
      %v638 = vpop.f32.mrb[0].mxu0
      %v639 = vadd.f32 %v555, %v638
      %v640 = vpop.f32.mrb[0].mxu0
      %641 = vmatprep.mubr.f32.mxu0 0.0
      %642 = vmatmul.mubr.f32.gmra.mrb[0].mxu0 %v530
      %v643 = vpop.f32.mrb[0].mxu0
      %v644 = vadd.f32 %v555, %v643
      %v645 = vpop.f32.mrb[0].mxu0
      %646 = vmatprep.mubr.f32.mxu0 0.0
      %647 = vmatmul.mubr.f32.gmra.mrb[0].mxu0 %v531
      %v648 = vpop.f32.mrb[0].mxu0
      %v649 = vadd.f32 %v555, %v648
      %v650 = vpop.f32.mrb[0].mxu0
      %651 = vmatprep.mubr.f32.mxu0 0.0
      %652 = vmatmul.mubr.f32.gmra.mrb[0].mxu0 %v532
      %v653 = vpop.f32.mrb[0].mxu0
      %v654 = vadd.f32 %v555, %v653
      %v655 = vpop.f32.mrb[0].mxu0
      %656 = vmatprep.mubr.f32.mxu0 0.0
      %657 = vmatmul.mubr.f32.gmra.mrb[0].mxu0 %v533
      %v658 = vpop.f32.mrb[0].mxu0
      %v659 = vadd.f32 %v555, %v658
      %v660 = vpop.f32.mrb[0].mxu0
      %661 = vdwg.mxu0
      %v662 = vmax.f32 %v624, 0.0
      %v663 = vmax.f32 %v629, 0.0
      %v664 = vmax.f32 %v634, 0.0
      %v665 = vmax.f32 %v639, 0.0
      %v666 = vmax.f32 %v644, 0.0
      %v667 = vmax.f32 %v649, 0.0
      %v668 = vmax.f32 %v654, 0.0
      %v669 = vmax.f32 %v659, 0.0
      %v670 = vld [vmem:[%s5] sm:$0xff]
      %v671 = vld [vmem:[%s5 + $0x8] sm:$0xff]
      %v672 = vld [vmem:[%s5 + $0x10] sm:$0xff]
      %v673 = vld [vmem:[%s5 + $0x18] sm:$0xff]
      %v674 = vld [vmem:[%s5 + $0x20] sm:$0xff]
      %v675 = vld [vmem:[%s5 + $0x28] sm:$0xff]
      %v676 = vld [vmem:[%s5 + $0x30] sm:$0xff]
      %v677 = vld [vmem:[%s5 + $0x38] sm:$0xff]
      %v678 = vld [vmem:[%s5 + $0x40] sm:$0xff]
      %v679 = vld [vmem:[%s5 + $0x48] sm:$0xff]
      %v680 = vld [vmem:[%s5 + $0x50] sm:$0xff]
      %v681 = vld [vmem:[%s5 + $0x58] sm:$0xff]
      %v682 = vld [vmem:[%s5 + $0x60] sm:$0xff]
      %v683 = vld [vmem:[%s5 + $0x68] sm:$0xff]
      %v684 = vld [vmem:[%s5 + $0x70] sm:$0xff]
      %v685 = vld [vmem:[%s5 + $0x78] sm:$0xff]
      %v686 = vld [vmem:[%s6] sm:$0x1]
      %v688 = vlaneseq
      %v689 = vshrl.u32 %v688, 7
      %v690 = vsub.s32 0, %v689
      %v691 = vrot.slane %v686, %v690
      %693 = vmatprep.subr.mxu0 0.0
      %694 = vmatpush1.msra.mxu0 %v670
      %695 = vmatprep.subr.mxu0 0.0
      %696 = vmatpush1.msra.mxu0 %v671
      %697 = vmatprep.subr.mxu0 0.0
      %698 = vmatpush1.msra.mxu0 %v672
      %699 = vmatprep.subr.mxu0 0.0
      %700 = vmatpush1.msra.mxu0 %v673
      %701 = vmatprep.subr.mxu0 0.0
      %702 = vmatpush1.msra.mxu0 %v674
      %703 = vmatprep.subr.mxu0 0.0
      %704 = vmatpush1.msra.mxu0 %v675
      %705 = vmatprep.subr.mxu0 0.0
      %706 = vmatpush1.msra.mxu0 %v676
      %707 = vmatprep.subr.mxu0 0.0
      %708 = vmatpush1.msra.mxu0 %v677
      %709 = vmatprep.subr.mxu0 0.0
      %710 = vmatpush1.msra.mxu0 %v678
      %711 = vmatprep.subr.mxu0 0.0
      %712 = vmatpush1.msra.mxu0 %v679
      %713 = vmatprep.subr.mxu0 0.0
      %714 = vmatpush1.msra.mxu0 %v680
      %715 = vmatprep.subr.mxu0 0.0
      %716 = vmatpush1.msra.mxu0 %v681
      %717 = vmatprep.subr.mxu0 0.0
      %718 = vmatpush1.msra.mxu0 %v682
      %719 = vmatprep.subr.mxu0 0.0
      %720 = vmatpush1.msra.mxu0 %v683
      %721 = vmatprep.subr.mxu0 0.0
      %722 = vmatpush1.msra.mxu0 %v684
      %723 = vmatprep.subr.mxu0 0.0
      %724 = vmatpush1.msra.mxu0 %v685
      %725 = vmatprep.subr.mxu0 0.0
      %726 = vmatpush1.msra.mxu0 0.0
      %727 = vmatprep.subr.mxu0 0.0
      %728 = vmatpush1.msra.mxu0 0.0
      %729 = vmatprep.subr.mxu0 0.0
      %730 = vmatpush1.msra.mxu0 0.0
      %731 = vmatprep.subr.mxu0 0.0
      %732 = vmatpush1.msra.mxu0 0.0
      %733 = vmatprep.subr.mxu0 0.0
      %734 = vmatpush1.msra.mxu0 0.0
      %735 = vmatprep.subr.mxu0 0.0
      %736 = vmatpush1.msra.mxu0 0.0
      %737 = vmatprep.subr.mxu0 0.0
      %738 = vmatpush1.msra.mxu0 0.0
      %739 = vmatprep.subr.mxu0 0.0
      %740 = vmatpush1.msra.mxu0 0.0
      %741 = vmatprep.subr.mxu0 0.0
      %742 = vmatpush1.msra.mxu0 0.0
      %743 = vmatprep.subr.mxu0 0.0
      %744 = vmatpush1.msra.mxu0 0.0
      %745 = vmatprep.subr.mxu0 0.0
      %746 = vmatpush1.msra.mxu0 0.0
      %747 = vmatprep.subr.mxu0 0.0
      %748 = vmatpush1.msra.mxu0 0.0
      %749 = vmatprep.subr.mxu0 0.0
      %750 = vmatpush1.msra.mxu0 0.0
      %751 = vmatprep.subr.mxu0 0.0
      %752 = vmatpush1.msra.mxu0 0.0
      %753 = vmatprep.subr.mxu0 0.0
      %754 = vmatpush1.msra.mxu0 0.0
      %755 = vmatprep.subr.mxu0 0.0
      %756 = vmatpush1.msra.mxu0 0.0
      %757 = vmatprep.mubr.f32.mxu0 0.0
      %758 = vmatmul.mubr.f32.gmra.mrb[0].mxu0 %v662
      %v759 = vpop.f32.mrb[0].mxu0
      %v760 = vadd.f32 %v691, %v759
      %v761 = vpop.f32.mrb[0].mxu0
      %762 = vmatprep.mubr.f32.mxu0 0.0
      %763 = vmatmul.mubr.f32.gmra.mrb[0].mxu0 %v663
      %v764 = vpop.f32.mrb[0].mxu0
      %v765 = vadd.f32 %v691, %v764
      %v766 = vpop.f32.mrb[0].mxu0
      %767 = vmatprep.mubr.f32.mxu0 0.0
      %768 = vmatmul.mubr.f32.gmra.mrb[0].mxu0 %v664
      %v769 = vpop.f32.mrb[0].mxu0
      %v770 = vadd.f32 %v691, %v769
      %v771 = vpop.f32.mrb[0].mxu0
      %772 = vmatprep.mubr.f32.mxu0 0.0
      %773 = vmatmul.mubr.f32.gmra.mrb[0].mxu0 %v665
      %v774 = vpop.f32.mrb[0].mxu0
      %v775 = vadd.f32 %v691, %v774
      %v776 = vpop.f32.mrb[0].mxu0
      %777 = vmatprep.mubr.f32.mxu0 0.0
      %778 = vmatmul.mubr.f32.gmra.mrb[0].mxu0 %v666
      %v779 = vpop.f32.mrb[0].mxu0
      %v780 = vadd.f32 %v691, %v779
      %v781 = vpop.f32.mrb[0].mxu0
      %782 = vmatprep.mubr.f32.mxu0 0.0
      %783 = vmatmul.mubr.f32.gmra.mrb[0].mxu0 %v667
      %v784 = vpop.f32.mrb[0].mxu0
      %v785 = vadd.f32 %v691, %v784
      %v786 = vpop.f32.mrb[0].mxu0
      %787 = vmatprep.mubr.f32.mxu0 0.0
      %788 = vmatmul.mubr.f32.gmra.mrb[0].mxu0 %v668
      %v789 = vpop.f32.mrb[0].mxu0
      %v790 = vadd.f32 %v691, %v789
      %v791 = vpop.f32.mrb[0].mxu0
      %792 = vmatprep.mubr.f32.mxu0 0.0
      %793 = vmatmul.mubr.f32.gmra.mrb[0].mxu0 %v669
      %v794 = vpop.f32.mrb[0].mxu0
      %v795 = vadd.f32 %v691, %v794
      %v796 = vpop.f32.mrb[0].mxu0
      %797 = vdwg.mxu0
      %v798 = vmax.f32 %v760, 0.0
      %v799 = vmax.f32 %v765, 0.0
      %v800 = vmax.f32 %v770, 0.0
      %v801 = vmax.f32 %v775, 0.0
      %v802 = vmax.f32 %v780, 0.0
      %v803 = vmax.f32 %v785, 0.0
      %v804 = vmax.f32 %v790, 0.0
      %v805 = vmax.f32 %v795, 0.0
      %v806 = vld [vmem:[%s7] sm:$0xff]
      %v807 = vld [vmem:[%s7 + $0x8] sm:$0xff]
      %v808 = vld [vmem:[%s7 + $0x10] sm:$0xff]
      %v809 = vld [vmem:[%s7 + $0x18] sm:$0xff]
      %v810 = vld [vmem:[%s7 + $0x20] sm:$0xff]
      %v811 = vld [vmem:[%s7 + $0x28] sm:$0xff]
      %v812 = vld [vmem:[%s7 + $0x30] sm:$0xff]
      %v813 = vld [vmem:[%s7 + $0x38] sm:$0xff]
      %v814 = vld [vmem:[%s7 + $0x40] sm:$0xff]
      %v815 = vld [vmem:[%s7 + $0x48] sm:$0xff]
      %v816 = vld [vmem:[%s7 + $0x50] sm:$0xff]
      %v817 = vld [vmem:[%s7 + $0x58] sm:$0xff]
      %v818 = vld [vmem:[%s7 + $0x60] sm:$0xff]
      %v819 = vld [vmem:[%s7 + $0x68] sm:$0xff]
      %v820 = vld [vmem:[%s7 + $0x70] sm:$0xff]
      %v821 = vld [vmem:[%s7 + $0x78] sm:$0xff]
      %v822 = vld [vmem:[%s8] sm:$0x1]
      %v824 = vlaneseq
      %v825 = vshrl.u32 %v824, 7
      %v826 = vsub.s32 0, %v825
      %v827 = vrot.slane %v822, %v826
      %829 = vmatprep.subr.mxu0 0.0
      %830 = vmatpush1.msra.mxu0 %v806
      %831 = vmatprep.subr.mxu0 0.0
      %832 = vmatpush1.msra.mxu0 %v807
      %833 = vmatprep.subr.mxu0 0.0
      %834 = vmatpush1.msra.mxu0 %v808
      %835 = vmatprep.subr.mxu0 0.0
      %836 = vmatpush1.msra.mxu0 %v809
      %837 = vmatprep.subr.mxu0 0.0
      %838 = vmatpush1.msra.mxu0 %v810
      %839 = vmatprep.subr.mxu0 0.0
      %840 = vmatpush1.msra.mxu0 %v811
      %841 = vmatprep.subr.mxu0 0.0
      %842 = vmatpush1.msra.mxu0 %v812
      %843 = vmatprep.subr.mxu0 0.0
      %844 = vmatpush1.msra.mxu0 %v813
      %845 = vmatprep.subr.mxu0 0.0
      %846 = vmatpush1.msra.mxu0 %v814
      %847 = vmatprep.subr.mxu0 0.0
      %848 = vmatpush1.msra.mxu0 %v815
      %849 = vmatprep.subr.mxu0 0.0
      %850 = vmatpush1.msra.mxu0 %v816
      %851 = vmatprep.subr.mxu0 0.0
      %852 = vmatpush1.msra.mxu0 %v817
      %853 = vmatprep.subr.mxu0 0.0
      %854 = vmatpush1.msra.mxu0 %v818
      %855 = vmatprep.subr.mxu0 0.0
      %856 = vmatpush1.msra.mxu0 %v819
      %857 = vmatprep.subr.mxu0 0.0
      %858 = vmatpush1.msra.mxu0 %v820
      %859 = vmatprep.subr.mxu0 0.0
      %860 = vmatpush1.msra.mxu0 %v821
      %861 = vmatprep.subr.mxu0 0.0
      %862 = vmatpush1.msra.mxu0 0.0
      %863 = vmatprep.subr.mxu0 0.0
      %864 = vmatpush1.msra.mxu0 0.0
      %865 = vmatprep.subr.mxu0 0.0
      %866 = vmatpush1.msra.mxu0 0.0
      %867 = vmatprep.subr.mxu0 0.0
      %868 = vmatpush1.msra.mxu0 0.0
      %869 = vmatprep.subr.mxu0 0.0
      %870 = vmatpush1.msra.mxu0 0.0
      %871 = vmatprep.subr.mxu0 0.0
      %872 = vmatpush1.msra.mxu0 0.0
      %873 = vmatprep.subr.mxu0 0.0
      %874 = vmatpush1.msra.mxu0 0.0
      %875 = vmatprep.subr.mxu0 0.0
      %876 = vmatpush1.msra.mxu0 0.0
      %877 = vmatprep.subr.mxu0 0.0
      %878 = vmatpush1.msra.mxu0 0.0
      %879 = vmatprep.subr.mxu0 0.0
      %880 = vmatpush1.msra.mxu0 0.0
      %881 = vmatprep.subr.mxu0 0.0
      %882 = vmatpush1.msra.mxu0 0.0
      %883 = vmatprep.subr.mxu0 0.0
      %884 = vmatpush1.msra.mxu0 0.0
      %885 = vmatprep.subr.mxu0 0.0
      %886 = vmatpush1.msra.mxu0 0.0
      %887 = vmatprep.subr.mxu0 0.0
      %888 = vmatpush1.msra.mxu0 0.0
      %889 = vmatprep.subr.mxu0 0.0
      %890 = vmatpush1.msra.mxu0 0.0
      %891 = vmatprep.subr.mxu0 0.0
      %892 = vmatpush1.msra.mxu0 0.0
      %893 = vmatprep.mubr.f32.mxu0 0.0
      %894 = vmatmul.mubr.f32.gmra.mrb[0].mxu0 %v798
      %v895 = vpop.f32.mrb[0].mxu0
      %v896 = vadd.f32 %v827, %v895
      %v897 = vpop.f32.mrb[0].mxu0
      %898 = vmatprep.mubr.f32.mxu0 0.0
      %899 = vmatmul.mubr.f32.gmra.mrb[0].mxu0 %v799
      %v900 = vpop.f32.mrb[0].mxu0
      %v901 = vadd.f32 %v827, %v900
      %v902 = vpop.f32.mrb[0].mxu0
      %903 = vmatprep.mubr.f32.mxu0 0.0
      %904 = vmatmul.mubr.f32.gmra.mrb[0].mxu0 %v800
      %v905 = vpop.f32.mrb[0].mxu0
      %v906 = vadd.f32 %v827, %v905
      %v907 = vpop.f32.mrb[0].mxu0
      %908 = vmatprep.mubr.f32.mxu0 0.0
      %909 = vmatmul.mubr.f32.gmra.mrb[0].mxu0 %v801
      %v910 = vpop.f32.mrb[0].mxu0
      %v911 = vadd.f32 %v827, %v910
      %v912 = vpop.f32.mrb[0].mxu0
      %913 = vmatprep.mubr.f32.mxu0 0.0
      %914 = vmatmul.mubr.f32.gmra.mrb[0].mxu0 %v802
      %v915 = vpop.f32.mrb[0].mxu0
      %v916 = vadd.f32 %v827, %v915
      %v917 = vpop.f32.mrb[0].mxu0
      %918 = vmatprep.mubr.f32.mxu0 0.0
      %919 = vmatmul.mubr.f32.gmra.mrb[0].mxu0 %v803
      %v920 = vpop.f32.mrb[0].mxu0
      %v921 = vadd.f32 %v827, %v920
      %v922 = vpop.f32.mrb[0].mxu0
      %923 = vmatprep.mubr.f32.mxu0 0.0
      %924 = vmatmul.mubr.f32.gmra.mrb[0].mxu0 %v804
      %v925 = vpop.f32.mrb[0].mxu0
      %v926 = vadd.f32 %v827, %v925
      %v927 = vpop.f32.mrb[0].mxu0
      %928 = vmatprep.mubr.f32.mxu0 0.0
      %929 = vmatmul.mubr.f32.gmra.mrb[0].mxu0 %v805
      %v930 = vpop.f32.mrb[0].mxu0
      %v931 = vadd.f32 %v827, %v930
      %v932 = vpop.f32.mrb[0].mxu0
      %933 = vdwg.mxu0
      %v934 = vmax.f32 %v896, 0.0
      %v935 = vmax.f32 %v901, 0.0
      %v936 = vmax.f32 %v906, 0.0
      %v937 = vmax.f32 %v911, 0.0
      %v938 = vmax.f32 %v916, 0.0
      %v939 = vmax.f32 %v921, 0.0
      %v940 = vmax.f32 %v926, 0.0
      %v941 = vmax.f32 %v931, 0.0
      %v942 = vld [vmem:[%s9] sm:$0xff]
      %v943 = vld [vmem:[%s9 + $0x8] sm:$0xff]
      %v944 = vld [vmem:[%s9 + $0x10] sm:$0xff]
      %v945 = vld [vmem:[%s9 + $0x18] sm:$0xff]
      %v946 = vld [vmem:[%s9 + $0x20] sm:$0xff]
      %v947 = vld [vmem:[%s9 + $0x28] sm:$0xff]
      %v948 = vld [vmem:[%s9 + $0x30] sm:$0xff]
      %v949 = vld [vmem:[%s9 + $0x38] sm:$0xff]
      %v950 = vld [vmem:[%s9 + $0x40] sm:$0xff]
      %v951 = vld [vmem:[%s9 + $0x48] sm:$0xff]
      %v952 = vld [vmem:[%s9 + $0x50] sm:$0xff]
      %v953 = vld [vmem:[%s9 + $0x58] sm:$0xff]
      %v954 = vld [vmem:[%s9 + $0x60] sm:$0xff]
      %v955 = vld [vmem:[%s9 + $0x68] sm:$0xff]
      %v956 = vld [vmem:[%s9 + $0x70] sm:$0xff]
      %v957 = vld [vmem:[%s9 + $0x78] sm:$0xff]
      %v958 = vld [vmem:[%s10] sm:$0x1]
      %v960 = vlaneseq
      %v961 = vshrl.u32 %v960, 7
      %v962 = vsub.s32 0, %v961
      %v963 = vrot.slane %v958, %v962
      %965 = vmatprep.subr.mxu0 0.0
      %966 = vmatpush1.msra.mxu0 %v942
      %967 = vmatprep.subr.mxu0 0.0
      %968 = vmatpush1.msra.mxu0 %v943
      %969 = vmatprep.subr.mxu0 0.0
      %970 = vmatpush1.msra.mxu0 %v944
      %971 = vmatprep.subr.mxu0 0.0
      %972 = vmatpush1.msra.mxu0 %v945
      %973 = vmatprep.subr.mxu0 0.0
      %974 = vmatpush1.msra.mxu0 %v946
      %975 = vmatprep.subr.mxu0 0.0
      %976 = vmatpush1.msra.mxu0 %v947
      %977 = vmatprep.subr.mxu0 0.0
      %978 = vmatpush1.msra.mxu0 %v948
      %979 = vmatprep.subr.mxu0 0.0
      %980 = vmatpush1.msra.mxu0 %v949
      %981 = vmatprep.subr.mxu0 0.0
      %982 = vmatpush1.msra.mxu0 %v950
      %983 = vmatprep.subr.mxu0 0.0
      %984 = vmatpush1.msra.mxu0 %v951
      %985 = vmatprep.subr.mxu0 0.0
      %986 = vmatpush1.msra.mxu0 %v952
      %987 = vmatprep.subr.mxu0 0.0
      %988 = vmatpush1.msra.mxu0 %v953
      %989 = vmatprep.subr.mxu0 0.0
      %990 = vmatpush1.msra.mxu0 %v954
      %991 = vmatprep.subr.mxu0 0.0
      %992 = vmatpush1.msra.mxu0 %v955
      %993 = vmatprep.subr.mxu0 0.0
      %994 = vmatpush1.msra.mxu0 %v956
      %995 = vmatprep.subr.mxu0 0.0
      %996 = vmatpush1.msra.mxu0 %v957
      %997 = vmatprep.subr.mxu0 0.0
      %998 = vmatpush1.msra.mxu0 0.0
      %999 = vmatprep.subr.mxu0 0.0
      %1000 = vmatpush1.msra.mxu0 0.0
      %1001 = vmatprep.subr.mxu0 0.0
      %1002 = vmatpush1.msra.mxu0 0.0
      %1003 = vmatprep.subr.mxu0 0.0
      %1004 = vmatpush1.msra.mxu0 0.0
      %1005 = vmatprep.subr.mxu0 0.0
      %1006 = vmatpush1.msra.mxu0 0.0
      %1007 = vmatprep.subr.mxu0 0.0
      %1008 = vmatpush1.msra.mxu0 0.0
      %1009 = vmatprep.subr.mxu0 0.0
      %1010 = vmatpush1.msra.mxu0 0.0
      %1011 = vmatprep.subr.mxu0 0.0
      %1012 = vmatpush1.msra.mxu0 0.0
      %1013 = vmatprep.subr.mxu0 0.0
      %1014 = vmatpush1.msra.mxu0 0.0
      %1015 = vmatprep.subr.mxu0 0.0
      %1016 = vmatpush1.msra.mxu0 0.0
      %1017 = vmatprep.subr.mxu0 0.0
      %1018 = vmatpush1.msra.mxu0 0.0
      %1019 = vmatprep.subr.mxu0 0.0
      %1020 = vmatpush1.msra.mxu0 0.0
      %1021 = vmatprep.subr.mxu0 0.0
      %1022 = vmatpush1.msra.mxu0 0.0
      %1023 = vmatprep.subr.mxu0 0.0
      %1024 = vmatpush1.msra.mxu0 0.0
      %1025 = vmatprep.subr.mxu0 0.0
      %1026 = vmatpush1.msra.mxu0 0.0
      %1027 = vmatprep.subr.mxu0 0.0
      %1028 = vmatpush1.msra.mxu0 0.0
      %1029 = vmatprep.mubr.f32.mxu0 0.0
      %1030 = vmatmul.mubr.f32.gmra.mrb[0].mxu0 %v934
      %v1031 = vpop.f32.mrb[0].mxu0
      %v1032 = vadd.f32 %v963, %v1031
      %v1033 = vpop.f32.mrb[0].mxu0
      %1034 = vmatprep.mubr.f32.mxu0 0.0
      %1035 = vmatmul.mubr.f32.gmra.mrb[0].mxu0 %v935
      %v1036 = vpop.f32.mrb[0].mxu0
      %v1037 = vadd.f32 %v963, %v1036
      %v1038 = vpop.f32.mrb[0].mxu0
      %1039 = vmatprep.mubr.f32.mxu0 0.0
      %1040 = vmatmul.mubr.f32.gmra.mrb[0].mxu0 %v936
      %v1041 = vpop.f32.mrb[0].mxu0
      %v1042 = vadd.f32 %v963, %v1041
      %v1043 = vpop.f32.mrb[0].mxu0
      %1044 = vmatprep.mubr.f32.mxu0 0.0
      %1045 = vmatmul.mubr.f32.gmra.mrb[0].mxu0 %v937
      %v1046 = vpop.f32.mrb[0].mxu0
      %v1047 = vadd.f32 %v963, %v1046
      %v1048 = vpop.f32.mrb[0].mxu0
      %1049 = vmatprep.mubr.f32.mxu0 0.0
      %1050 = vmatmul.mubr.f32.gmra.mrb[0].mxu0 %v938
      %v1051 = vpop.f32.mrb[0].mxu0
      %v1052 = vadd.f32 %v963, %v1051
      %v1053 = vpop.f32.mrb[0].mxu0
      %1054 = vmatprep.mubr.f32.mxu0 0.0
      %1055 = vmatmul.mubr.f32.gmra.mrb[0].mxu0 %v939
      %v1056 = vpop.f32.mrb[0].mxu0
      %v1057 = vadd.f32 %v963, %v1056
      %v1058 = vpop.f32.mrb[0].mxu0
      %1059 = vmatprep.mubr.f32.mxu0 0.0
      %1060 = vmatmul.mubr.f32.gmra.mrb[0].mxu0 %v940
      %v1061 = vpop.f32.mrb[0].mxu0
      %v1062 = vadd.f32 %v963, %v1061
      %v1063 = vpop.f32.mrb[0].mxu0
      %1064 = vmatprep.mubr.f32.mxu0 0.0
      %1065 = vmatmul.mubr.f32.gmra.mrb[0].mxu0 %v941
      %v1066 = vpop.f32.mrb[0].mxu0
      %v1067 = vadd.f32 %v963, %v1066
      %v1068 = vpop.f32.mrb[0].mxu0
      %1069 = vdwg.mxu0
      %1070 = vst [vmem:[%s388] sm:$0xff] %v1032
      %1071 = vst [vmem:[%s388 + $0x8] sm:$0xff] %v1037
      %1072 = vst [vmem:[%s388 + $0x10] sm:$0xff] %v1042
      %1073 = vst [vmem:[%s388 + $0x18] sm:$0xff] %v1047
      %1074 = vst [vmem:[%s388 + $0x20] sm:$0xff] %v1052
      %1075 = vst [vmem:[%s388 + $0x28] sm:$0xff] %v1057
      %1076 = vst [vmem:[%s388 + $0x30] sm:$0xff] %v1062
      %1077 = vst [vmem:[%s388 + $0x38] sm:$0xff] %v1067
      %s1078 = smul.u32 8, %s22
      %p1079 = scmp.lt.s32.totalorder %s1078, 31
      %s1080 = scalar_select %p1079, %s1078, 31
      %s1081 = smul.addr %s1080, 8
      %s1082 = scalar_lea.vmem %s11, %s1081
      // Predicated region
      $region65: #{mlp_forward.1} parent=63 // pred_check
        %p1083 = pneg %p276
      $region66: #{mlp_forward.1} parent=63 // pred_check_branch
        %1085 = sbr.rel (%p1083) target = $region68
      $region67: #{mlp_forward.1} parent=63 // pred_region
        %s1086 = smul.u32 8, %s22
      $region68: #{mlp_forward.1} parent=63 // pred_fallthru
        _
    $region64: #{mlp_forward.1} parent=5 // pred_fallthru
      _
    %p1087 = scmp.le.s32.totalorder 2, %s17
    // Predicated region
    $region69: #{mlp_forward.1} parent=5 // pred_check
      %p1088 = pneg %p1087
    $region70: #{mlp_forward.1} parent=5 // pred_check_branch
      %1090 = sbr.rel (%p1088) target = $region72
    $region71: #{mlp_forward.1} parent=5 // pred_region
      %s1091 = ssub.s32 %s17, 2
      // Predicated region
      $region73: #{mlp_forward.1} parent=71 // pred_check
        %p1092 = pneg %p282
      $region74: #{mlp_forward.1} parent=71 // pred_check_branch
        %1094 = sbr.rel (%p1092) target = $region76
      $region75: #{mlp_forward.1} parent=71 // pred_region
        %s1095 = smul.u32 8, %s23
        %p1096 = scmp.lt.s32.totalorder %s1095, 31
        %s1097 = scalar_select %p1096, %s1095, 31
        %s1098 = smul.addr %s1097, 8
        %s1099 = scalar_lea.vmem %s11, %s1098
      $region76: #{mlp_forward.1} parent=71 // pred_fallthru
        _
    $region72: #{mlp_forward.1} parent=5 // pred_fallthru
      _
  $region6: #{mlp_forward.1} parent=0 // loop_footer
    %s21 = sadd.s32 1, %s17
  $region7: #{mlp_forward.1} parent=0 // loop_footer_branch
    %16 = sbr.rel target = $region3
  $region8: #{mlp_forward.1} parent=0 // loop_exit
    _

</llo_original>
